<compile_context>
chip_gen: v6e
topology: v6e:2x2x1
jax: 0.10.0
libtpu: 0.0.40
codegen_flags: <defaults>
</compile_context>

<pallas_src>
import jax
import jax.numpy as jnp
from jax.experimental import pallas as pl
from jax.experimental.pallas import tpu as pltpu


def rad_relu_kernel(x_ref, t_ref, o_ref):
    # x_ref : (g_tile, d, m_tile) VMEM block  (lane axis = points m)
    # t_ref : (g_tile, 1, 1)      VMEM block  (per-(batch, cloud) threshold)
    # o_ref : (g_tile, d, m_tile)
    x = x_ref[...]                            # already f32; no redundant cast
    d = x.shape[1]

    # |x|^2 via an unrolled sum over the static, tiny coordinate axis:
    # VPU multiply/adds on full-lane vregs — no XLU lane reduction.
    ss = x[:, 0:1, :] * x[:, 0:1, :]
    for k in range(1, d):
        ss = ss + x[:, k:k + 1, :] * x[:, k:k + 1, :]

    norm = jnp.sqrt(ss) + 1e-7                # (g_tile, 1, m_tile)

    # Fold relu + divide into one per-point scale.  approx=False keeps full
    # f32 accuracy (approx=True would risk the 1e-5 tolerance).
    scale = jnp.maximum(norm - t_ref[...], 0.0) * pl.reciprocal(norm, approx=False)

    # One full, unmasked, lane-dense store of the whole block.
    o_ref[...] = (x * scale).astype(o_ref.dtype)


def _largest_divisor_tile(total, cap, align):
    """Largest t <= cap with total % t == 0 and t % align == 0; else `total`
    (a full-extent block always satisfies the TPU (8,128) layout rule)."""
    if total <= cap:
        return total
    t = (cap // align) * align
    while t >= align:
        if total % t == 0:
            return t
        t -= align
    return total


# ~2 MiB f32 per block; with input+output double-buffered that is ~8 MiB of
# VMEM — inside v7x's 32 MiB scoped default and far under v5e/v6e's 128 MiB.
_MAX_BLOCK_ELEMS = 512 * 1024


def rad_relu(x, thres):
    """x: (B, n_in, m, d) float32; thres: (1, n_in) float32."""
    B, N, M, D = x.shape
    G = B * N

    # Lane-dense layout: (B*n_in, d, m) with the large m axis on lanes.
    # TODO(synk): plumb the (..., d, m) layout end-to-end through the model so
    # these wrapper transposes disappear entirely.
    x3 = jnp.transpose(x, (0, 1, 3, 2)).reshape(G, D, M)
    t3 = jnp.broadcast_to(thres.reshape(1, N), (B, N)).reshape(G, 1, 1)

    # Tile m (lane axis) in multiples of 128 (or take it whole), then fuse as
    # many point clouds per step as fit the per-block VMEM budget.
    m_tile = _largest_divisor_tile(M, max(128, _MAX_BLOCK_ELEMS // D), 128)
    g_tile = _largest_divisor_tile(G, max(1, _MAX_BLOCK_ELEMS // (D * m_tile)), 1)
    grid = (G // g_tile, M // m_tile)

    out3 = pl.pallas_call(
        rad_relu_kernel,
        out_shape=jax.ShapeDtypeStruct((G, D, M), x.dtype),
        grid=grid,
        in_specs=[
            pl.BlockSpec((g_tile, D, m_tile), lambda g, m: (g, 0, m)),
            pl.BlockSpec((g_tile, 1, 1), lambda g, m: (g, 0, 0)),
        ],
        out_specs=pl.BlockSpec((g_tile, D, m_tile), lambda g, m: (g, 0, m)),
        compiler_params=pltpu.CompilerParams(
            dimension_semantics=("parallel", "parallel")),
    )(x3, t3)

    return jnp.transpose(out3.reshape(B, N, D, M), (0, 1, 3, 2))


def rad_relu_ref(x, thres):
    """Pure-JAX reference mirroring the PyTorch forward exactly."""
    norms = jnp.sqrt(jnp.sum(x ** 2, axis=3)) + 1e-7          # (B, n_in, m)
    x_unit = x / norms[..., None]
    return jnp.maximum(norms - thres[:, :, None], 0.0)[..., None] * x_unit


if __name__ == "__main__":
    # Shapes implied by the module: (batch_size, n_in, m, d) point clouds.
    B, n_in, m, d = 2, 4, 128, 3
    tau = 0.5

    key = jax.random.PRNGKey(0)
    x = jax.random.normal(key, (B, n_in, m, d), dtype=jnp.float32)

    # Deterministic parameter init: init.constant_(thres, tau)
    thres = jnp.full((1, n_in), tau, dtype=jnp.float32)

    out = jax.block_until_ready(rad_relu(x, thres))

    ref = rad_relu_ref(x, thres)
    assert out.shape == x.shape and out.dtype == x.dtype
    assert jnp.allclose(out, ref, atol=1e-5, rtol=1e-5), "mismatch vs reference"

    print("KERNEL_OK")
</pallas_src>

<mosaic_0001>
module attributes {stable_mosaic.version = 11 : i64} {
  func.func @rad_relu_kernel(%arg0: i32, %arg1: i32, %arg2: memref<8x3x128xf32, #tpu.memory_space<vmem>>, %arg3: memref<8x1x1xf32, #tpu.memory_space<vmem>>, %arg4: memref<8x3x128xf32, #tpu.memory_space<vmem>>) attributes {dimension_semantics = [#tpu.dimension_semantics<parallel>, #tpu.dimension_semantics<parallel>], iteration_bounds = array<i64: 1, 1>, scalar_prefetch = 0 : i64, scratch_operands = 0 : i64, tpu.core_type = #tpu.core_type<tc>, window_params = [{transform_indices = @transform_0, window_bounds = array<i64: 8, 3, 128>}, {transform_indices = @transform_1, window_bounds = array<i64: 8, 1, 1>}, {transform_indices = @transform_2, window_bounds = array<i64: 8, 3, 128>}]} {
    %c0 = arith.constant 0 : index
    %c0_0 = arith.constant 0 : index
    %c0_1 = arith.constant 0 : index
    %0 = vector.load %arg2[%c0, %c0_0, %c0_1] : memref<8x3x128xf32, #tpu.memory_space<vmem>>, vector<8x3x128xf32>
    %1 = vector.extract_strided_slice %0 {offsets = [0, 0, 0], sizes = [8, 1, 128], strides = [1, 1, 1]} : vector<8x3x128xf32> to vector<8x1x128xf32>
    %2 = vector.extract_strided_slice %0 {offsets = [0, 0, 0], sizes = [8, 1, 128], strides = [1, 1, 1]} : vector<8x3x128xf32> to vector<8x1x128xf32>
    %3 = arith.mulf %1, %2 : vector<8x1x128xf32>
    %4 = vector.extract_strided_slice %0 {offsets = [0, 1, 0], sizes = [8, 1, 128], strides = [1, 1, 1]} : vector<8x3x128xf32> to vector<8x1x128xf32>
    %5 = vector.extract_strided_slice %0 {offsets = [0, 1, 0], sizes = [8, 1, 128], strides = [1, 1, 1]} : vector<8x3x128xf32> to vector<8x1x128xf32>
    %6 = arith.mulf %4, %5 : vector<8x1x128xf32>
    %7 = arith.addf %3, %6 : vector<8x1x128xf32>
    %8 = vector.extract_strided_slice %0 {offsets = [0, 2, 0], sizes = [8, 1, 128], strides = [1, 1, 1]} : vector<8x3x128xf32> to vector<8x1x128xf32>
    %9 = vector.extract_strided_slice %0 {offsets = [0, 2, 0], sizes = [8, 1, 128], strides = [1, 1, 1]} : vector<8x3x128xf32> to vector<8x1x128xf32>
    %10 = arith.mulf %8, %9 : vector<8x1x128xf32>
    %11 = arith.addf %7, %10 : vector<8x1x128xf32>
    %12 = math.sqrt %11 : vector<8x1x128xf32>
    %cst = arith.constant 1.000000e-07 : f32
    %13 = vector.broadcast %cst : f32 to vector<8x1x128xf32>
    %14 = arith.addf %12, %13 : vector<8x1x128xf32>
    %c0_2 = arith.constant 0 : index
    %c0_3 = arith.constant 0 : index
    %c0_4 = arith.constant 0 : index
    %15 = vector.load %arg3[%c0_2, %c0_3, %c0_4] : memref<8x1x1xf32, #tpu.memory_space<vmem>>, vector<8x1x1xf32>
    %16 = vector.broadcast %15 : vector<8x1x1xf32> to vector<8x1x128xf32>
    %17 = arith.subf %14, %16 : vector<8x1x128xf32>
    %cst_5 = arith.constant 0.000000e+00 : f32
    %18 = vector.broadcast %cst_5 : f32 to vector<8x1x128xf32>
    %19 = arith.maximumf %17, %18 : vector<8x1x128xf32>
    %20 = tpu.reciprocal %14 : vector<8x1x128xf32> -> vector<8x1x128xf32>
    %21 = arith.mulf %19, %20 : vector<8x1x128xf32>
    %22 = vector.broadcast %21 : vector<8x1x128xf32> to vector<8x3x128xf32>
    %23 = arith.mulf %0, %22 : vector<8x3x128xf32>
    %c0_6 = arith.constant 0 : index
    %c0_7 = arith.constant 0 : index
    %c0_8 = arith.constant 0 : index
    %24 = vector.load %arg4[%c0_6, %c0_7, %c0_8] : memref<8x3x128xf32, #tpu.memory_space<vmem>>, vector<8x3x128xf32>
    tpu.vector_store %arg4[%c0_6, %c0_7, %c0_8], %23 {strides = array<i32>} : memref<8x3x128xf32, #tpu.memory_space<vmem>>, vector<8x3x128xf32>,
    return
  }
  func.func @transform_0(%arg0: i32, %arg1: i32) -> (i32, i32, i32) {
    %c0_i32 = arith.constant 0 : i32
    %c0_i32_0 = arith.constant 0 : i32
    return %arg0, %c0_i32, %arg1 : i32, i32, i32
  }
  func.func @transform_1(%arg0: i32, %arg1: i32) -> (i32, i32, i32) {
    %c0_i32 = arith.constant 0 : i32
    %c0_i32_0 = arith.constant 0 : i32
    %c0_i32_1 = arith.constant 0 : i32
    return %arg0, %c0_i32, %c0_i32_0 : i32, i32, i32
  }
  func.func @transform_2(%arg0: i32, %arg1: i32) -> (i32, i32, i32) {
    %c0_i32 = arith.constant 0 : i32
    %c0_i32_0 = arith.constant 0 : i32
    return %arg0, %c0_i32, %arg1 : i32, i32, i32
  }
}

</mosaic_0001>

<llo_original>
// kernel: tpu_custom_call.1
$region0: #{tpu_custom_call.1}
  #allocation0 [shape = 'u32[]', space=smem, size = 0x4, offset = 0x4, fixed_abs, tag = 'smem constant byte address 0x4 - core index']
  #allocation1 [shape = 'u32[144,128]{1,0:T(1,128)}', space=vmem, size = 0x12000, scoped, tag = 'internal scratch']
  %s0 = inlined_call_operand.vmem [shape: f32[8,3,128], index: 0, kind: input, shape index: {}]
  %s1 = inlined_call_operand.vmem [shape: f32[8,1,1], index: 1, kind: input, shape index: {}]
  %s2 = inlined_call_operand.vmem [shape: f32[8,3,128], index: 2, kind: output, shape index: {}]
  %s3 = sld [smem:[#allocation0]]
  $region18: #{tpu_custom_call.1} parent=0
    _
  %s5 = ssub.s32 1, %s3
  %s6 = scalar_select 0, %s5, %s3
  // Predicated region
  $region2: #{tpu_custom_call.1} parent=0 // pred_check
    _
  $region3: #{tpu_custom_call.1} parent=0 // pred_check_branch
    %8 = sbr.rel (0) target = $region5
  $region4: #{tpu_custom_call.1} parent=0 // pred_region
    _
  $region5: #{tpu_custom_call.1} parent=0 // pred_fallthru
    _
  // Predicated region
  $region6: #{tpu_custom_call.1} parent=0 // pred_check
    _
  $region7: #{tpu_custom_call.1} parent=0 // pred_check_branch
    %10 = sbr.rel (0) target = $region9
  $region8: #{tpu_custom_call.1} parent=0 // pred_region
    _
  $region9: #{tpu_custom_call.1} parent=0 // pred_fallthru
    _
  %v11 = vld [vmem:[%s0] sm:$0x7]
  %v12 = vld [vmem:[%s0 + $0x4] sm:$0x7]
  %v13 = vld [vmem:[%s0 + $0x8] sm:$0x7]
  %v14 = vld [vmem:[%s0 + $0xc] sm:$0x7]
  %v15 = vld [vmem:[%s0 + $0x10] sm:$0x7]
  %v16 = vld [vmem:[%s0 + $0x14] sm:$0x7]
  %v17 = vld [vmem:[%s0 + $0x18] sm:$0x7]
  %v18 = vld [vmem:[%s0 + $0x1c] sm:$0x7]
  %v19 = vmul.f32 %v11, %v11
  %v20 = vmul.f32 %v12, %v12
  %v21 = vmul.f32 %v13, %v13
  %v22 = vmul.f32 %v14, %v14
  %v23 = vmul.f32 %v15, %v15
  %v24 = vmul.f32 %v16, %v16
  %v25 = vmul.f32 %v17, %v17
  %v26 = vmul.f32 %v18, %v18
  %v35 = vrot.slane %v19, 1
  %v36 = vrot.slane %v20, 1
  %v37 = vrot.slane %v21, 1
  %v38 = vrot.slane %v22, 1
  %v39 = vrot.slane %v23, 1
  %v40 = vrot.slane %v24, 1
  %v41 = vrot.slane %v25, 1
  %v42 = vrot.slane %v26, 1
  %v51 = vadd.f32 %v19, %v35
  %v52 = vadd.f32 %v20, %v36
  %v53 = vadd.f32 %v21, %v37
  %v54 = vadd.f32 %v22, %v38
  %v55 = vadd.f32 %v23, %v39
  %v56 = vadd.f32 %v24, %v40
  %v57 = vadd.f32 %v25, %v41
  %v58 = vadd.f32 %v26, %v42
  %v59 = vrot.slane %v19, 2
  %v60 = vrot.slane %v20, 2
  %v61 = vrot.slane %v21, 2
  %v62 = vrot.slane %v22, 2
  %v63 = vrot.slane %v23, 2
  %v64 = vrot.slane %v24, 2
  %v65 = vrot.slane %v25, 2
  %v66 = vrot.slane %v26, 2
  %v75 = vadd.f32 %v51, %v59
  %v76 = vadd.f32 %v52, %v60
  %v77 = vadd.f32 %v53, %v61
  %v78 = vadd.f32 %v54, %v62
  %v79 = vadd.f32 %v55, %v63
  %v80 = vadd.f32 %v56, %v64
  %v81 = vadd.f32 %v57, %v65
  %v82 = vadd.f32 %v58, %v66
  %v83 = vrsqrt.pop %v75
  %v84 = vmul.f32 %v75, %v83
  %vm85 = vcmp.eq.f32.partialorder %v75, inf
  %v86 = vsel %vm85, %v75, %v84
  %vm87 = vcmp.eq.f32.partialorder %v75, 0.0
  %v88 = vand.u32 %v75, 2147483648
  %v89 = vsel %vm87, %v88, %v86
  %v90 = vrsqrt.pop %v76
  %v91 = vmul.f32 %v76, %v90
  %vm92 = vcmp.eq.f32.partialorder %v76, inf
  %v93 = vsel %vm92, %v76, %v91
  %vm94 = vcmp.eq.f32.partialorder %v76, 0.0
  %v95 = vand.u32 %v76, 2147483648
  %v96 = vsel %vm94, %v95, %v93
  %v97 = vrsqrt.pop %v77
  %v98 = vmul.f32 %v77, %v97
  %vm99 = vcmp.eq.f32.partialorder %v77, inf
  %v100 = vsel %vm99, %v77, %v98
  %vm101 = vcmp.eq.f32.partialorder %v77, 0.0
  %v102 = vand.u32 %v77, 2147483648
  %v103 = vsel %vm101, %v102, %v100
  %v104 = vrsqrt.pop %v78
  %v105 = vmul.f32 %v78, %v104
  %vm106 = vcmp.eq.f32.partialorder %v78, inf
  %v107 = vsel %vm106, %v78, %v105
  %vm108 = vcmp.eq.f32.partialorder %v78, 0.0
  %v109 = vand.u32 %v78, 2147483648
  %v110 = vsel %vm108, %v109, %v107
  %v111 = vrsqrt.pop %v79
  %v112 = vmul.f32 %v79, %v111
  %vm113 = vcmp.eq.f32.partialorder %v79, inf
  %v114 = vsel %vm113, %v79, %v112
  %vm115 = vcmp.eq.f32.partialorder %v79, 0.0
  %v116 = vand.u32 %v79, 2147483648
  %v117 = vsel %vm115, %v116, %v114
  %v118 = vrsqrt.pop %v80
  %v119 = vmul.f32 %v80, %v118
  %vm120 = vcmp.eq.f32.partialorder %v80, inf
  %v121 = vsel %vm120, %v80, %v119
  %vm122 = vcmp.eq.f32.partialorder %v80, 0.0
  %v123 = vand.u32 %v80, 2147483648
  %v124 = vsel %vm122, %v123, %v121
  %v125 = vrsqrt.pop %v81
  %v126 = vmul.f32 %v81, %v125
  %vm127 = vcmp.eq.f32.partialorder %v81, inf
  %v128 = vsel %vm127, %v81, %v126
  %vm129 = vcmp.eq.f32.partialorder %v81, 0.0
  %v130 = vand.u32 %v81, 2147483648
  %v131 = vsel %vm129, %v130, %v128
  %v132 = vrsqrt.pop %v82
  %v133 = vmul.f32 %v82, %v132
  %vm134 = vcmp.eq.f32.partialorder %v82, inf
  %v135 = vsel %vm134, %v82, %v133
  %vm136 = vcmp.eq.f32.partialorder %v82, 0.0
  %v137 = vand.u32 %v82, 2147483648
  %v138 = vsel %vm136, %v137, %v135
  %v139 = vadd.f32 %v89, 1e-07
  %v140 = vadd.f32 %v96, 1e-07
  %v141 = vadd.f32 %v103, 1e-07
  %v142 = vadd.f32 %v110, 1e-07
  %v143 = vadd.f32 %v117, 1e-07
  %v144 = vadd.f32 %v124, 1e-07
  %v145 = vadd.f32 %v131, 1e-07
  %v146 = vadd.f32 %v138, 1e-07
  %v147 = vld [vmem:[%s1] sm:$0x1]
  %v148 = vld [vmem:[%s1 + $0x1] sm:$0x1]
  %v149 = vld [vmem:[%s1 + $0x2] sm:$0x1]
  %v150 = vld [vmem:[%s1 + $0x3] sm:$0x1]
  %v151 = vld [vmem:[%s1 + $0x4] sm:$0x1]
  %v152 = vld [vmem:[%s1 + $0x5] sm:$0x1]
  %v153 = vld [vmem:[%s1 + $0x6] sm:$0x1]
  %v154 = vld [vmem:[%s1 + $0x7] sm:$0x1]
  %156 = vset.pattern.permute.xlu0 0
  %157 = vperm.xlu0 %156, %v147
  %v158 = vpop.permute.xlu0 %157
  %v160 = vlaneseq
  %v161 = vshrl.u32 %v160, 7
  %v162 = vsub.s32 0, %v161
  %v163 = vrot.slane %v158, %v162
  %165 = vset.pattern.permute.xlu0 0
  %166 = vperm.xlu0 %165, %v148
  %v167 = vpop.permute.xlu0 %166
  %v169 = vlaneseq
  %v170 = vshrl.u32 %v169, 7
  %v171 = vsub.s32 0, %v170
  %v172 = vrot.slane %v167, %v171
  %174 = vset.pattern.permute.xlu0 0
  %175 = vperm.xlu0 %174, %v149
  %v176 = vpop.permute.xlu0 %175
  %v178 = vlaneseq
  %v179 = vshrl.u32 %v178, 7
  %v180 = vsub.s32 0, %v179
  %v181 = vrot.slane %v176, %v180
  %183 = vset.pattern.permute.xlu0 0
  %184 = vperm.xlu0 %183, %v150
  %v185 = vpop.permute.xlu0 %184
  %v187 = vlaneseq
  %v188 = vshrl.u32 %v187, 7
  %v189 = vsub.s32 0, %v188
  %v190 = vrot.slane %v185, %v189
  %192 = vset.pattern.permute.xlu0 0
  %193 = vperm.xlu0 %192, %v151
  %v194 = vpop.permute.xlu0 %193
  %v196 = vlaneseq
  %v197 = vshrl.u32 %v196, 7
  %v198 = vsub.s32 0, %v197
  %v199 = vrot.slane %v194, %v198
  %201 = vset.pattern.permute.xlu0 0
  %202 = vperm.xlu0 %201, %v152
  %v203 = vpop.permute.xlu0 %202
  %v205 = vlaneseq
  %v206 = vshrl.u32 %v205, 7
  %v207 = vsub.s32 0, %v206
  %v208 = vrot.slane %v203, %v207
  %210 = vset.pattern.permute.xlu0 0
  %211 = vperm.xlu0 %210, %v153
  %v212 = vpop.permute.xlu0 %211
  %v214 = vlaneseq
  %v215 = vshrl.u32 %v214, 7
  %v216 = vsub.s32 0, %v215
  %v217 = vrot.slane %v212, %v216
  %219 = vset.pattern.permute.xlu0 0
  %220 = vperm.xlu0 %219, %v154
  %v221 = vpop.permute.xlu0 %220
  %v223 = vlaneseq
  %v224 = vshrl.u32 %v223, 7
  %v225 = vsub.s32 0, %v224
  %v226 = vrot.slane %v221, %v225
  %v227 = vsub.f32 %v139, %v163
  %v228 = vsub.f32 %v140, %v172
  %v229 = vsub.f32 %v141, %v181
  %v230 = vsub.f32 %v142, %v190
  %v231 = vsub.f32 %v143, %v199
  %v232 = vsub.f32 %v144, %v208
  %v233 = vsub.f32 %v145, %v217
  %v234 = vsub.f32 %v146, %v226
  %v235 = vmax.f32 %v227, 0.0
  %v236 = vmax.f32 %v228, 0.0
  %v237 = vmax.f32 %v229, 0.0
  %v238 = vmax.f32 %v230, 0.0
  %v239 = vmax.f32 %v231, 0.0
  %v240 = vmax.f32 %v232, 0.0
  %v241 = vmax.f32 %v233, 0.0
  %v242 = vmax.f32 %v234, 0.0
  %v243 = vrcp.pop %v139
  %v244 = vrcp.pop %v140
  %v245 = vrcp.pop %v141
  %v246 = vrcp.pop %v142
  %v247 = vrcp.pop %v143
  %v248 = vrcp.pop %v144
  %v249 = vrcp.pop %v145
  %v250 = vrcp.pop %v146
  %v251 = vmul.f32 %v235, %v243
  %v252 = vmul.f32 %v236, %v244
  %v253 = vmul.f32 %v237, %v245
  %v254 = vmul.f32 %v238, %v246
  %v255 = vmul.f32 %v239, %v247
  %v256 = vmul.f32 %v240, %v248
  %v257 = vmul.f32 %v241, %v249
  %v258 = vmul.f32 %v242, %v250
  %v259 = vlaneseq
  %v260 = vshrl.u32 %v259, 7
  %v261 = vsub.s32 0, %v260
  %v262 = vrot.slane %v251, %v261
  %v263 = vlaneseq
  %v264 = vshrl.u32 %v263, 7
  %v265 = vsub.s32 0, %v264
  %v266 = vrot.slane %v252, %v265
  %v267 = vlaneseq
  %v268 = vshrl.u32 %v267, 7
  %v269 = vsub.s32 0, %v268
  %v270 = vrot.slane %v253, %v269
  %v271 = vlaneseq
  %v272 = vshrl.u32 %v271, 7
  %v273 = vsub.s32 0, %v272
  %v274 = vrot.slane %v254, %v273
  %v275 = vlaneseq
  %v276 = vshrl.u32 %v275, 7
  %v277 = vsub.s32 0, %v276
  %v278 = vrot.slane %v255, %v277
  %v279 = vlaneseq
  %v280 = vshrl.u32 %v279, 7
  %v281 = vsub.s32 0, %v280
  %v282 = vrot.slane %v256, %v281
  %v283 = vlaneseq
  %v284 = vshrl.u32 %v283, 7
  %v285 = vsub.s32 0, %v284
  %v286 = vrot.slane %v257, %v285
  %v287 = vlaneseq
  %v288 = vshrl.u32 %v287, 7
  %v289 = vsub.s32 0, %v288
  %v290 = vrot.slane %v258, %v289
  %v291 = vmul.f32 %v11, %v262
  %v292 = vmul.f32 %v12, %v266
  %v293 = vmul.f32 %v13, %v270
  %v294 = vmul.f32 %v14, %v274
  %v295 = vmul.f32 %v15, %v278
  %v296 = vmul.f32 %v16, %v282
  %v297 = vmul.f32 %v17, %v286
  %v298 = vmul.f32 %v18, %v290
  %299 = vst [vmem:[%s2] sm:$0x7] %v291
  %300 = vst [vmem:[%s2 + $0x4] sm:$0x7] %v292
  %301 = vst [vmem:[%s2 + $0x8] sm:$0x7] %v293
  %302 = vst [vmem:[%s2 + $0xc] sm:$0x7] %v294
  %303 = vst [vmem:[%s2 + $0x10] sm:$0x7] %v295
  %304 = vst [vmem:[%s2 + $0x14] sm:$0x7] %v296
  %305 = vst [vmem:[%s2 + $0x18] sm:$0x7] %v297
  %306 = vst [vmem:[%s2 + $0x1c] sm:$0x7] %v298
  // Predicated region
  $region10: #{tpu_custom_call.1} parent=0 // pred_check
    _
  $region11: #{tpu_custom_call.1} parent=0 // pred_check_branch
    %308 = sbr.rel (0) target = $region13
  $region12: #{tpu_custom_call.1} parent=0 // pred_region
    _
  $region13: #{tpu_custom_call.1} parent=0 // pred_fallthru
    _
  // Predicated region
  $region14: #{tpu_custom_call.1} parent=0 // pred_check
    _
  $region15: #{tpu_custom_call.1} parent=0 // pred_check_branch
    %310 = sbr.rel (0) target = $region17
  $region16: #{tpu_custom_call.1} parent=0 // pred_region
    _
  $region17: #{tpu_custom_call.1} parent=0 // pred_fallthru
    _

</llo_original>
